<compile_context>
chip_gen: v6e
topology: v6e:2x2x1
jax: 0.10.0
libtpu: 0.0.40
codegen_flags: <defaults>
</compile_context>

<pallas_src>
import functools

import jax
import jax.numpy as jnp
from jax.experimental import pallas as pl
from jax.experimental.pallas import tpu as pltpu


# ----------------------------------------------------------------------------
# Per-generation sizing (review: derive VMEM limit / tile budget from hardware)
# ----------------------------------------------------------------------------


@functools.cache
def _physical_vmem_bytes():
    try:
        info = pltpu.get_tpu_info()
        v = int(getattr(info, "vmem_capacity_bytes", 0) or 0)
        if v > 0:
            return v
    except Exception:
        pass
    return 64 * 1024 * 1024  # conservative default (v7x-sized VMEM per TensorCore)


def _vmem_limit_bytes():
    # Leave >=16 MiB headroom for compiler-internal scratch; cap at 64 MiB
    # (~48 MiB on v7x, 64 MiB on the 128-MiB v5e/v6e parts).
    phys = _physical_vmem_bytes()
    return int(max(32 * 1024 * 1024, min(phys - 16 * 1024 * 1024, 64 * 1024 * 1024)))


def _default_target_block_bytes():
    # 128-MiB parts (v5e/v6e): bigger blocks amortize the ~0.35us per-step cost.
    # 64-MiB v7x: keep ~6 MiB input blocks so attn (weight + f32 logits scratch)
    # still double-buffers comfortably.
    if _physical_vmem_bytes() >= 96 * 1024 * 1024:
        return 16 * 1024 * 1024
    return 6 * 1024 * 1024


# ----------------------------------------------------------------------------
# One-time capability probes (tiny pallas_calls, cached)
# ----------------------------------------------------------------------------


@functools.cache
def _lane_strided_loads_ok():
    """True iff Mosaic lowers lane-strided (last-dim) ref loads correctly here."""
    try:
        def kern(x_ref, o_ref):
            o_ref[...] = (x_ref[:, pl.ds(0, 128, stride=2)]
                          + x_ref[:, pl.ds(1, 128, stride=2)])

        x = jnp.arange(8 * 256, dtype=jnp.float32).reshape(8, 256)
        out = pl.pallas_call(
            kern, out_shape=jax.ShapeDtypeStruct((8, 128), jnp.float32))(x)
        out = jax.block_until_ready(out)
        return bool(jnp.allclose(out, x[:, 0::2] + x[:, 1::2]))
    except Exception:
        return False


@functools.cache
def _single_buffer_ok():
    """True iff BlockSpec(pipeline_mode=pl.Buffered(1)) compiles and runs."""
    try:
        def kern(a_ref, o_ref):
            o_ref[...] = a_ref[...] * 2.0

        a = jnp.ones((8, 128), jnp.float32)
        out = pl.pallas_call(
            kern,
            out_shape=jax.ShapeDtypeStruct((2, 8, 128), jnp.float32),
            grid=(2,),
            in_specs=[pl.BlockSpec((8, 128), lambda i: (0, 0),
                                   pipeline_mode=pl.Buffered(1))],
            out_specs=pl.BlockSpec((None, 8, 128), lambda i: (i, 0, 0)),
        )(a)
        out = jax.block_until_ready(out)
        return bool(jnp.allclose(out, 2.0))
    except Exception:
        return False


def _constant_block_spec(shape, index_map):
    # Constant-index block (the attn weight): a single VMEM buffer is enough;
    # default 2-deep buffering would waste a full extra weight copy of VMEM.
    if _single_buffer_ok():
        return pl.BlockSpec(shape, index_map, pipeline_mode=pl.Buffered(1))
    return pl.BlockSpec(shape, index_map)


def _compiler_params(fusable):
    return pltpu.CompilerParams(
        dimension_semantics=("parallel", "parallel"),
        vmem_limit_bytes=_vmem_limit_bytes(),
        allow_input_fusion=list(fusable),
    )


# ----------------------------------------------------------------------------
# Tile sizing
# ----------------------------------------------------------------------------


def _pick_length_tile(lp, c, pool_size, itemsize, target_block_bytes,
                      *, max_lanes=2048, min_grid_tiles=4):
    """Pooled-length tile TL (output lanes per grid step).

    * sized from a per-block byte budget (input block = C x P*TL),
    * capped so the length axis keeps >= min_grid_tiles grid steps when the
      sequence is long enough (BlockSpec double-buffering + v7x megacore),
    * prefers an exact 128-multiple divisor of Lp so no tile is ragged.
    """
    lanes = target_block_bytes // max(1, c * pool_size * itemsize)
    lanes = max(128, min(max_lanes, (lanes // 128) * 128))
    if lp >= min_grid_tiles * 128:
        lanes = min(lanes, max(128, (lp // (min_grid_tiles * 128)) * 128))
    if lp <= lanes:
        return lp                       # single full-extent tile (small inputs)
    tl = (lanes // 128) * 128
    while tl >= 128:                    # exact divisor -> no masked tail block
        if lp % tl == 0:
            return tl
        tl -= 128
    return lanes                        # no aligned divisor: tail block masked


# ----------------------------------------------------------------------------
# Kernels (shared between the lane-strided and the relayout fallback layouts;
# `win(ref, k)` returns the (C, TL) slab of window offset k)
# ----------------------------------------------------------------------------


def _avg_pool_kernel(x_ref, o_ref, *, pool_size, win):
    acc = win(x_ref, 0).astype(jnp.float32)            # f32 accumulation
    for k in range(1, pool_size):
        acc = acc + win(x_ref, k).astype(jnp.float32)
    o_ref[...] = (acc * (1.0 / pool_size)).astype(o_ref.dtype)


def _max_pool_kernel(x_ref, o_ref, *, pool_size, win):
    m = win(x_ref, 0)                                   # stay in input dtype
    for k in range(1, pool_size):
        m = jnp.maximum(m, win(x_ref, k))
    o_ref[...] = m.astype(o_ref.dtype)


def _attn_pool_kernel(w_ref, x_ref, o_ref, logits_ref, *, pool_size, win,
                      interleaved):
    # Enformer AttentionPool: logits = 1x1 conv over channels, softmax over the
    # window axis, output = sum_window(x * attn).  The matmul runs in
    # w_ref.dtype (bf16 when requested -> MXU-native); accumulation is f32.
    w = w_ref[...]
    cdt = w.dtype
    if interleaved:
        # one wide MXU matmul over all pool_size*TL positions at once
        logits_ref[...] = jnp.dot(w, x_ref[...].astype(cdt),
                                  preferred_element_type=jnp.float32)
    else:
        for k in range(pool_size):
            logits_ref[k] = jnp.dot(w, x_ref[k].astype(cdt),
                                    preferred_element_type=jnp.float32)

    # Fused, numerically-stable softmax over the window offsets + weighted sum.
    m = win(logits_ref, 0)
    for k in range(1, pool_size):
        m = jnp.maximum(m, win(logits_ref, k))

    e = jnp.exp(win(logits_ref, 0) - m)
    den = e
    num = win(x_ref, 0).astype(jnp.float32) * e
    for k in range(1, pool_size):
        e = jnp.exp(win(logits_ref, k) - m)
        den = den + e
        num = num + win(x_ref, k).astype(jnp.float32) * e

    # Reciprocal runs on the otherwise-idle EUP slot; exact keeps f32 numerics.
    o_ref[...] = (num * pl.reciprocal(den, approx=False)).astype(o_ref.dtype)


# ----------------------------------------------------------------------------
# Wrapper (glue)
# ----------------------------------------------------------------------------


def pool(x, func, pool_size=None, weight=None, *, target_block_bytes=None,
         attn_logits_dtype=None, lane_strided=None):
    """Pallas equivalent of Enformer Pool.forward on an (N, C, L) tensor.

    func: 'avg' | 'max' | 'attn' | None (identity).
    weight: (C, C) 1x1-conv weight, required for 'attn'.
    attn_logits_dtype: dtype of the attn logits matmul (default: f32, or bf16
        when the input is already bf16).  Pass jnp.bfloat16 for MXU-native
        speed with slightly relaxed numerics.
    lane_strided: None = auto-probe Mosaic lane-strided load support; True/False
        forces the relayout-free / relayout path.
    """
    if func is None:
        return x  # nn.Identity

    if pool_size is None or pool_size < 1:
        raise ValueError("pool_size must be a positive integer")

    N, C, L = x.shape
    P = int(pool_size)
    Lp = L // P
    if Lp < 1:
        raise ValueError("sequence length must be >= pool_size")

    if target_block_bytes is None:
        target_block_bytes = _default_target_block_bytes()
    # attn needs extra VMEM for the weight + f32 logits scratch -> smaller tile.
    budget = target_block_bytes if func != "attn" else max(
        256 * 1024, target_block_bytes // 2)
    tl = _pick_length_tile(Lp, C, P, x.dtype.itemsize, budget)
    lt = pl.cdiv(Lp, tl)

    if lane_strided is None:
        lane_strided = _lane_strided_loads_ok()

    if lane_strided:
        # Natural (N, C, L) layout, zero extra HBM traffic: window offset k of
        # pooled position j lives at lane j*P + k of the (C, P*TL) block and is
        # gathered with a lane-strided ref load.
        def win(ref, k):
            return ref[:, pl.ds(k, tl, stride=P)]

        if (P * tl) % 128 == 0:
            xin = x                      # unused / partial tail is just masked
        else:
            xin = x[:, :, : Lp * P]      # full-extent block must match exactly
        x_spec = pl.BlockSpec((None, C, P * tl), lambda n, t: (n, 0, t))
        logits_shape = (C, P * tl)
    else:
        # Fallback: one explicit relayout (N, C, Lp, P) -> (P, N, C, Lp) so each
        # window offset is a contiguous (C, TL) slab.  Costs one extra HBM
        # read + write of the input (no jnp.pad: ragged tails are masked).
        xin = x[:, :, : Lp * P].reshape(N, C, Lp, P).transpose(3, 0, 1, 2)

        def win(ref, k):
            return ref[k]

        x_spec = pl.BlockSpec((P, None, C, tl), lambda n, t: (0, n, 0, t))
        logits_shape = (P, C, tl)

    out_shape = jax.ShapeDtypeStruct((N, C, Lp), x.dtype)
    o_spec = pl.BlockSpec((None, C, tl), lambda n, t: (n, 0, t))
    grid = (N, lt)

    if func == "avg":
        kern = functools.partial(_avg_pool_kernel, pool_size=P, win=win)
        return pl.pallas_call(
            kern, out_shape=out_shape, grid=grid,
            in_specs=[x_spec], out_specs=o_spec,
            compiler_params=_compiler_params(fusable=(0,)),
        )(xin)

    if func == "max":
        kern = functools.partial(_max_pool_kernel, pool_size=P, win=win)
        return pl.pallas_call(
            kern, out_shape=out_shape, grid=grid,
            in_specs=[x_spec], out_specs=o_spec,
            compiler_params=_compiler_params(fusable=(0,)),
        )(xin)

    if func == "attn":
        if weight is None or weight.shape != (C, C):
            raise ValueError("attention pooling needs a (C, C) 1x1-conv weight")
        if attn_logits_dtype is None:
            attn_logits_dtype = (jnp.bfloat16 if x.dtype == jnp.bfloat16
                                 else jnp.float32)
        w_in = weight.astype(attn_logits_dtype)
        w_spec = _constant_block_spec((C, C), lambda n, t: (0, 0))
        kern = functools.partial(_attn_pool_kernel, pool_size=P, win=win,
                                 interleaved=lane_strided)
        return pl.pallas_call(
            kern, out_shape=out_shape, grid=grid,
            in_specs=[w_spec, x_spec], out_specs=o_spec,
            scratch_shapes=[pltpu.VMEM(logits_shape, jnp.float32)],
            compiler_params=_compiler_params(fusable=(1,)),
        )(w_in, xin)

    raise NotImplementedError(func)


# ----------------------------------------------------------------------------
# Pure-JAX reference
# ----------------------------------------------------------------------------


def _ref_pool(x, func, pool_size=None, weight=None, logits_dtype=None):
    if func is None:
        return x
    N, C, L = x.shape
    Lp = L // pool_size
    xw = (x[:, :, : Lp * pool_size]
          .reshape(N, C, Lp, pool_size).astype(jnp.float32))
    if func == "avg":
        return xw.mean(-1).astype(x.dtype)
    if func == "max":
        return xw.max(-1).astype(x.dtype)
    if func == "attn":
        w, xq = weight, xw
        if logits_dtype is not None:
            w, xq = w.astype(logits_dtype), xw.astype(logits_dtype)
        logits = jnp.einsum("oc,ncwp->nowp", w, xq,
                            preferred_element_type=jnp.float32)
        attn = jax.nn.softmax(logits, axis=-1)
        return (xw * attn).sum(-1).astype(x.dtype)
    raise NotImplementedError(func)


# ----------------------------------------------------------------------------
# main
# ----------------------------------------------------------------------------


if __name__ == "__main__":
    key = jax.random.PRNGKey(0)
    kx, kw, kx2 = jax.random.split(key, 3)

    # Small shape (single full-extent tile per sample).
    N, C, L, P = 2, 8, 16, 4
    x = jax.random.normal(kx, (N, C, L), dtype=jnp.float32)

    # Enformer AttentionPool init: dirac (identity) * 2, plus a small
    # deterministic perturbation so the softmax path is exercised nontrivially.
    w = 2.0 * jnp.eye(C, dtype=jnp.float32) + 0.05 * jax.random.normal(
        kw, (C, C), dtype=jnp.float32)

    checks = []
    # Auto mode (lane-strided path if supported, otherwise relayout fallback).
    checks.append(("avg", pool(x, "avg", pool_size=P),
                   _ref_pool(x, "avg", P), 1e-5))
    checks.append(("max", pool(x, "max", pool_size=P),
                   _ref_pool(x, "max", P), 1e-5))
    checks.append(("attn_f32", pool(x, "attn", pool_size=P, weight=w),
                   _ref_pool(x, "attn", P, weight=w), 1e-5))
    checks.append(("attn_bf16",
                   pool(x, "attn", pool_size=P, weight=w,
                        attn_logits_dtype=jnp.bfloat16),
                   _ref_pool(x, "attn", P, weight=w,
                             logits_dtype=jnp.bfloat16), 5e-4))
    checks.append(("identity", pool(x, None), _ref_pool(x, None), 0.0))

    # Force the relayout fallback so both code paths are exercised everywhere.
    checks.append(("avg_relayout",
                   pool(x, "avg", pool_size=P, lane_strided=False),
                   _ref_pool(x, "avg", P), 1e-5))
    checks.append(("max_relayout",
                   pool(x, "max", pool_size=P, lane_strided=False),
                   _ref_pool(x, "max", P), 1e-5))
    checks.append(("attn_relayout",
                   pool(x, "attn", pool_size=P, weight=w, lane_strided=False),
                   _ref_pool(x, "attn", P, weight=w), 1e-5))

    # Longer sequence with a small per-block budget to exercise the tiled
    # (N, Lt) grid / pipelined path (TL = 128, Lt = 4).
    L2, P2 = 1024, 2
    x2 = jax.random.normal(kx2, (N, C, L2), dtype=jnp.float32)
    small_budget = 8 * 1024
    checks.append(("avg_tiled",
                   pool(x2, "avg", pool_size=P2,
                        target_block_bytes=small_budget),
                   _ref_pool(x2, "avg", P2), 1e-5))
    checks.append(("max_tiled",
                   pool(x2, "max", pool_size=P2,
                        target_block_bytes=small_budget),
                   _ref_pool(x2, "max", P2), 1e-5))
    checks.append(("attn_tiled",
                   pool(x2, "attn", pool_size=P2, weight=w,
                        target_block_bytes=small_budget),
                   _ref_pool(x2, "attn", P2, weight=w), 1e-5))
    checks.append(("avg_tiled_relayout",
                   pool(x2, "avg", pool_size=P2,
                        target_block_bytes=small_budget, lane_strided=False),
                   _ref_pool(x2, "avg", P2), 1e-5))

    for name, out, ref, tol in checks:
        out = jax.block_until_ready(out)
        assert out.shape == ref.shape, name
        if tol:
            assert jnp.allclose(out, ref, rtol=tol, atol=tol), name
        else:
            assert bool(jnp.all(out == ref)), name

    print("KERNEL_OK")
</pallas_src>

<mosaic_0001>
module attributes {stable_mosaic.version = 11 : i64} {
  func.func @kern(%arg0: memref<8x256xf32, #tpu.memory_space<vmem>>, %arg1: memref<8x128xf32, #tpu.memory_space<vmem>>) attributes {dimension_semantics = [], scalar_prefetch = 0 : i64, scratch_operands = 0 : i64, tpu.core_type = #tpu.core_type<tc>} {
    %c0 = arith.constant 0 : index
    %c0_0 = arith.constant 0 : index
    %0 = tpu.strided_load %arg0[%c0, %c0_0] {strides = array<i32: 1, 2>} : memref<8x256xf32, #tpu.memory_space<vmem>>, vector<8x128xf32>
    %c0_1 = arith.constant 0 : index
    %c1 = arith.constant 1 : index
    %1 = tpu.strided_load %arg0[%c0_1, %c1] {strides = array<i32: 1, 2>} : memref<8x256xf32, #tpu.memory_space<vmem>>, vector<8x128xf32>
    %2 = arith.addf %0, %1 : vector<8x128xf32>
    %c0_2 = arith.constant 0 : index
    %c0_3 = arith.constant 0 : index
    %3 = vector.load %arg1[%c0_2, %c0_3] : memref<8x128xf32, #tpu.memory_space<vmem>>, vector<8x128xf32>
    tpu.vector_store %arg1[%c0_2, %c0_3], %2 {strides = array<i32>} : memref<8x128xf32, #tpu.memory_space<vmem>>, vector<8x128xf32>,
    return
  }
}

module attributes {stable_mosaic.version = 11 : i64} {
  func.func @_avg_pool_kernel(%arg0: i32, %arg1: i32, %arg2: memref<4x1x8x4xf32, #tpu.memory_space<vmem>>, %arg3: memref<1x8x4xf32, #tpu.memory_space<vmem>>) attributes {dimension_semantics = [#tpu.dimension_semantics<parallel>, #tpu.dimension_semantics<parallel>], iteration_bounds = array<i64: 2, 1>, scalar_prefetch = 0 : i64, scratch_operands = 0 : i64, tpu.core_type = #tpu.core_type<tc>, window_params = [{transform_indices = @transform_0, window_bounds = array<i64: 4, 1, 8, 4>}, {transform_indices = @transform_1, window_bounds = array<i64: 1, 8, 4>}]} {
    %c0 = arith.constant 0 : index
    %c0_0 = arith.constant 0 : index
    %c0_1 = arith.constant 0 : index
    %c0_2 = arith.constant 0 : index
    %0 = vector.load %arg2[%c0, %c0_0, %c0_1, %c0_2] : memref<4x1x8x4xf32, #tpu.memory_space<vmem>>, vector<1x1x8x4xf32>
    %1 = vector.shape_cast %0 : vector<1x1x8x4xf32> to vector<8x4xf32>
    %c1 = arith.constant 1 : index
    %c0_3 = arith.constant 0 : index
    %c0_4 = arith.constant 0 : index
    %c0_5 = arith.constant 0 : index
    %2 = vector.load %arg2[%c1, %c0_3, %c0_4, %c0_5] : memref<4x1x8x4xf32, #tpu.memory_space<vmem>>, vector<1x1x8x4xf32>
    %3 = vector.shape_cast %2 : vector<1x1x8x4xf32> to vector<8x4xf32>
    %4 = arith.addf %1, %3 : vector<8x4xf32>
    %c2 = arith.constant 2 : index
    %c0_6 = arith.constant 0 : index
    %c0_7 = arith.constant 0 : index
    %c0_8 = arith.constant 0 : index
    %5 = vector.load %arg2[%c2, %c0_6, %c0_7, %c0_8] : memref<4x1x8x4xf32, #tpu.memory_space<vmem>>, vector<1x1x8x4xf32>
    %6 = vector.shape_cast %5 : vector<1x1x8x4xf32> to vector<8x4xf32>
    %7 = arith.addf %4, %6 : vector<8x4xf32>
    %c3 = arith.constant 3 : index
    %c0_9 = arith.constant 0 : index
    %c0_10 = arith.constant 0 : index
    %c0_11 = arith.constant 0 : index
    %8 = vector.load %arg2[%c3, %c0_9, %c0_10, %c0_11] : memref<4x1x8x4xf32, #tpu.memory_space<vmem>>, vector<1x1x8x4xf32>
    %9 = vector.shape_cast %8 : vector<1x1x8x4xf32> to vector<8x4xf32>
    %10 = arith.addf %7, %9 : vector<8x4xf32>
    %cst = arith.constant 2.500000e-01 : f32
    %11 = vector.broadcast %cst : f32 to vector<8x4xf32>
    %12 = arith.mulf %10, %11 : vector<8x4xf32>
    %c0_12 = arith.constant 0 : index
    %c0_13 = arith.constant 0 : index
    %c0_14 = arith.constant 0 : index
    %13 = vector.load %arg3[%c0_12, %c0_13, %c0_14] : memref<1x8x4xf32, #tpu.memory_space<vmem>>, vector<1x8x4xf32>
    %14 = vector.shape_cast %13 : vector<1x8x4xf32> to vector<8x4xf32>
    %15 = vector.shape_cast %12 : vector<8x4xf32> to vector<1x8x4xf32>
    tpu.vector_store %arg3[%c0_12, %c0_13, %c0_14], %15 {strides = array<i32>} : memref<1x8x4xf32, #tpu.memory_space<vmem>>, vector<1x8x4xf32>,
    return
  }
  func.func @transform_0(%arg0: i32, %arg1: i32) -> (i32, i32, i32, i32) {
    %c0_i32 = arith.constant 0 : i32
    %c0_i32_0 = arith.constant 0 : i32
    %c0_i32_1 = arith.constant 0 : i32
    return %c0_i32, %arg0, %c0_i32_0, %arg1 : i32, i32, i32, i32
  }
  func.func @transform_1(%arg0: i32, %arg1: i32) -> (i32, i32, i32) {
    %c0_i32 = arith.constant 0 : i32
    %c0_i32_0 = arith.constant 0 : i32
    return %arg0, %c0_i32, %arg1 : i32, i32, i32
  }
}

</mosaic_0001>

<llo_original>
// kernel: tpu_custom_call.1
$region0: #{tpu_custom_call.1}
  #allocation0 [shape = 'u32[]', space=smem, size = 0x4, offset = 0x4, fixed_abs, tag = 'smem constant byte address 0x4 - core index']
  #allocation1 [shape = 'u32[144,128]{1,0:T(1,128)}', space=vmem, size = 0x12000, scoped, tag = 'internal scratch']
  %s0 = inlined_call_operand.vmem [shape: f32[4,2,8,4], index: 0, kind: input, shape index: {}]
  %s1 = inlined_call_operand.vmem [shape: f32[2,8,4], index: 1, kind: output, shape index: {}]
  %s2 = sld [smem:[#allocation0]]
  $region75: #{tpu_custom_call.1} parent=0
    _
  %s4 = ssub.s32 1, %s2
  %s5 = scalar_select 0, %s4, %s2
  $region1: #{tpu_custom_call.1} parent=0
    #allocation2 [shape = 'u8[32768]{0}', space=vmem, size = 0x8000, scoped, tag = 'input window, operand 0']
    loop: start=0, step=1, limit=4
    $region2: #{tpu_custom_call.1} parent=1 // loop_pre_header
      _
    $region3: #{tpu_custom_call.1} parent=1 // loop_header
      %s7 = sphi 0, %s11
      %p8 = scmp.ge.s32.totalorder %s7, 4
      %s14 = sphi 0, %s26
      %s15 = sphi 0, %s22
      %s16 = sphi 0, %s14
      %s17 = sphi 0, %s15
      %s18 = sphi 0, %s16
      %s19 = sphi 0, %s17
      %s31 = sphi 0, %s33
      %s34 = sphi 0, %s31
      %s35 = sphi 0, %s34
      %s51 = sphi 0, %s35
      %s59 = sphi 0, %s61
      %s62 = sphi 0, %s59
      %s63 = sphi 0, %s62
      %s79 = sphi 0, %s63
    $region4: #{tpu_custom_call.1} parent=1 // loop_header_branch
      %10 = sbr.rel (%p8) target = $region8
    $region5: #{tpu_custom_call.1} parent=1 // loop_body
      %s12 = ssub.s32 %s7, 1
      %s13 = ssub.s32 %s7, 2
      %s20 = sadd.s32 1, %s15
      %p21 = scmp.ge.s32.totalorder %s20, 1
      %s22 = scalar_select %p21, 0, %s20
      %s23 = sadd.s32 1, %s14
      %s24 = scalar_select %p21, %s23, %s14
      %p25 = scmp.ge.s32.totalorder %s24, 2
      %s26 = scalar_select %p25, 0, %s24
      %s27 = ssub.s32 %s14, %s26
      %s28 = ssub.s32 %s15, %s22
      %s29 = sor.u32 %s27, %s28
      %p30 = scmp.eq.s32.totalorder %s29, 0
      %s32 = sadd.s32 %s31, 1
      %s33 = scalar_select %p30, %s31, %s32
      %p36 = pneg %p30
      %p37 = scmp.eq.s32.totalorder %s7, 1
      %p38 = por %p36, %p37
      %p39 = scmp.ne.s32.totalorder %s31, %s34
      %p40 = scmp.eq.s32.totalorder %s7, 0
      %p41 = por %p39, %p40
      %p42 = scmp.ne.s32.totalorder %s31, %s34
      %p43 = scmp.eq.s32.totalorder %s12, 1
      %p44 = por %p42, %p43
      %p45 = scmp.ne.s32.totalorder %s34, %s35
      %p46 = scmp.eq.s32.totalorder %s12, 0
      %p47 = por %p45, %p46
      %p48 = scmp.ne.s32.totalorder %s34, %s35
      %p49 = scmp.eq.s32.totalorder %s13, 1
      %p50 = por %p48, %p49
      %p52 = scmp.ne.s32.totalorder %s35, %s51
      %p53 = scmp.eq.s32.totalorder %s13, 0
      %p54 = por %p52, %p53
      %s55 = ssub.s32 %s14, %s26
      %s56 = ssub.s32 %s15, %s22
      %s57 = sor.u32 %s55, %s56
      %p58 = scmp.eq.s32.totalorder %s57, 0
      %s60 = sadd.s32 %s59, 1
      %s61 = scalar_select %p58, %s59, %s60
      %p64 = pneg %p58
      %p65 = scmp.eq.s32.totalorder %s7, 1
      %p66 = por %p64, %p65
      %p67 = scmp.ne.s32.totalorder %s59, %s62
      %p68 = scmp.eq.s32.totalorder %s7, 0
      %p69 = por %p67, %p68
      %p70 = scmp.ne.s32.totalorder %s59, %s62
      %p71 = scmp.eq.s32.totalorder %s12, 1
      %p72 = por %p70, %p71
      %p73 = scmp.ne.s32.totalorder %s62, %s63
      %p74 = scmp.eq.s32.totalorder %s12, 0
      %p75 = por %p73, %p74
      %p76 = scmp.ne.s32.totalorder %s62, %s63
      %p77 = scmp.eq.s32.totalorder %s13, 1
      %p78 = por %p76, %p77
      %p80 = scmp.ne.s32.totalorder %s63, %s79
      %p81 = scmp.eq.s32.totalorder %s13, 0
      %p82 = por %p80, %p81
      %p83 = scmp.le.s32.totalorder 1, %s7
      %p84 = scmp.lt.s32.totalorder %s7, 3
      %p85 = pnand %p83, %p84
      %p86 = pneg %p85
      // Predicated region
      $region9: #{tpu_custom_call.1} parent=5 // pred_check
        _
      $region10: #{tpu_custom_call.1} parent=5 // pred_check_branch
        %88 = sbr.rel (%p85) target = $region12
      $region11: #{tpu_custom_call.1} parent=5 // pred_region
        %s89 = ssub.s32 %s7, 1
      $region12: #{tpu_custom_call.1} parent=5 // pred_fallthru
        _
      %p90 = scmp.lt.s32.totalorder %s7, 2
      // Predicated region
      $region13: #{tpu_custom_call.1} parent=5 // pred_check
        %p91 = pneg %p90
      $region14: #{tpu_custom_call.1} parent=5 // pred_check_branch
        %93 = sbr.rel (%p91) target = $region16
      $region15: #{tpu_custom_call.1} parent=5 // pred_region
        // Predicated region
        $region17: #{tpu_custom_call.1} parent=15 // pred_check
          %p94 = pneg %p41
        $region18: #{tpu_custom_call.1} parent=15 // pred_check_branch
          %96 = sbr.rel (%p94) target = $region20
        $region19: #{tpu_custom_call.1} parent=15 // pred_region
          %s97 = sand.u32 %s31, 1
          %s98 = sand.u32 %s31, 1
          %s99 = smul.addr %s98, 32
          %s100 = scalar_lea.vmem [#allocation2], %s99
          %s101 = sadd.s32 %s15, %s14
          %s102 = smul.addr %s101, 8
          %s103 = scalar_lea.vmem %s0, %s102
          // Predicated region
          $region21: #{tpu_custom_call.1} parent=19 // pred_check
            _
          $region22: #{tpu_custom_call.1} parent=19 // pred_check_branch
            %105 = sbr.rel (0) target = $region24
          $region23: #{tpu_custom_call.1} parent=19 // pred_region
            // Predicated region
            $region25: #{tpu_custom_call.1} parent=23 // pred_check
              _
            $region26: #{tpu_custom_call.1} parent=23 // pred_check_branch
              %107 = sbr.rel (0) target = $region28
            $region27: #{tpu_custom_call.1} parent=23 // pred_region
              // Predicated region
              $region40: #{tpu_custom_call.1} parent=27 // pred_check
                _
              $region41: #{tpu_custom_call.1} parent=27 // pred_check_branch
                %129 = sbr.rel (0) target = $region43
              $region42: #{tpu_custom_call.1} parent=27 // pred_region
                loop: start=0, step=1, limit=1
                $region44: #{tpu_custom_call.1} parent=42 // loop_pre_header
                  _
                $region45: #{tpu_custom_call.1} parent=42 // loop_header
                  %s131 = sphi 0, %s135
                  %p132 = scmp.ge.s32.totalorder %s131, 1
                  %s136 = sphi %s103, %s103
                  %s137 = sphi %s100, %s100
                $region46: #{tpu_custom_call.1} parent=42 // loop_header_branch
                  %134 = sbr.rel (%p132) target = $region50
                $region47: #{tpu_custom_call.1} parent=42 // loop_body
                  %v138 = vld [vmem:[%s136] sm:$0xff]
                  %139 = vst [vmem:[%s137] sm:$0xff] %v138
                  %v140 = vld [vmem:[%s136 + $0x10] sm:$0xff]
                  %141 = vst [vmem:[%s137 + $0x8] sm:$0xff] %v140
                  %v142 = vld [vmem:[%s136 + $0x20] sm:$0xff]
                  %143 = vst [vmem:[%s137 + $0x10] sm:$0xff] %v142
                  %v144 = vld [vmem:[%s136 + $0x30] sm:$0xff]
                  %145 = vst [vmem:[%s137 + $0x18] sm:$0xff] %v144
                $region48: #{tpu_custom_call.1} parent=42 // loop_footer
                  %s135 = sadd.s32 1, %s131
                $region49: #{tpu_custom_call.1} parent=42 // loop_footer_branch
                  %130 = sbr.rel target = $region45
                $region50: #{tpu_custom_call.1} parent=42 // loop_exit
                  _
              $region43: #{tpu_custom_call.1} parent=27 // pred_fallthru
                _
              // Predicated region
              $region51: #{tpu_custom_call.1} parent=27 // pred_check
                _
              $region52: #{tpu_custom_call.1} parent=27 // pred_check_branch
                %147 = sbr.rel target = $region54
              $region53: #{tpu_custom_call.1} parent=27 // pred_region
                _
              $region54: #{tpu_custom_call.1} parent=27 // pred_fallthru
                _
            $region28: #{tpu_custom_call.1} parent=23 // pred_fallthru
              _
            // Predicated region
            $region29: #{tpu_custom_call.1} parent=23 // pred_check
              _
            $region30: #{tpu_custom_call.1} parent=23 // pred_check_branch
              %109 = sbr.rel target = $region32
            $region31: #{tpu_custom_call.1} parent=23 // pred_region
              %s111 = ssub.s32 256, 1
              loop: start=0, step=1, limit=1
              $region33: #{tpu_custom_call.1} parent=31 // loop_pre_header
                _
              $region34: #{tpu_custom_call.1} parent=31 // loop_header
                %s113 = sphi 0, %s117
                %p114 = scmp.ge.s32.totalorder %s113, 1
                %s118 = sphi %s103, %s103
                %s119 = sphi %s100, %s100
              $region35: #{tpu_custom_call.1} parent=31 // loop_header_branch
                %116 = sbr.rel (%p114) target = $region39
              $region36: #{tpu_custom_call.1} parent=31 // loop_body
                %v120 = vld [vmem:[%s118] sm:%s111]
                %121 = vst [vmem:[%s119] sm:%s111] %v120
                %v122 = vld [vmem:[%s118 + $0x10] sm:%s111]
                %123 = vst [vmem:[%s119 + $0x8] sm:%s111] %v122
                %v124 = vld [vmem:[%s118 + $0x20] sm:%s111]
                %125 = vst [vmem:[%s119 + $0x10] sm:%s111] %v124
                %v126 = vld [vmem:[%s118 + $0x30] sm:%s111]
                %127 = vst [vmem:[%s119 + $0x18] sm:%s111] %v126
              $region37: #{tpu_custom_call.1} parent=31 // loop_footer
                %s117 = sadd.s32 1, %s113
              $region38: #{tpu_custom_call.1} parent=31 // loop_footer_branch
                %112 = sbr.rel target = $region34
              $region39: #{tpu_custom_call.1} parent=31 // loop_exit
                _
            $region32: #{tpu_custom_call.1} parent=23 // pred_fallthru
              _
          $region24: #{tpu_custom_call.1} parent=19 // pred_fallthru
            _
          %148 = vnop
        $region20: #{tpu_custom_call.1} parent=15 // pred_fallthru
          _
      $region16: #{tpu_custom_call.1} parent=5 // pred_fallthru
        _
      %p149 = scmp.le.s32.totalorder 1, %s7
      %p150 = scmp.lt.s32.totalorder %s7, 3
      %p151 = pnand %p149, %p150
      %p152 = pneg %p151
      // Predicated region
      $region55: #{tpu_custom_call.1} parent=5 // pred_check
        _
      $region56: #{tpu_custom_call.1} parent=5 // pred_check_branch
        %154 = sbr.rel (%p151) target = $region58
      $region57: #{tpu_custom_call.1} parent=5 // pred_region
        %s155 = ssub.s32 %s7, 1
        %s156 = sand.u32 %s34, 1
        %s157 = sand.u32 %s34, 1
        %s158 = smul.addr %s157, 32
        %s159 = scalar_lea.vmem [#allocation2], %s158
        // Predicated region
        $region59: #{tpu_custom_call.1} parent=57 // pred_check
          %p160 = pneg %p47
        $region60: #{tpu_custom_call.1} parent=57 // pred_check_branch
          %162 = sbr.rel (%p160) target = $region62
        $region61: #{tpu_custom_call.1} parent=57 // pred_region
          _
        $region62: #{tpu_custom_call.1} parent=57 // pred_fallthru
          _
        %s163 = sand.u32 %s34, 1
        %s164 = sand.u32 %s34, 1
        %s165 = smul.addr %s164, 32
        %s166 = scalar_lea.vmem [#allocation2], %s165
        %p167 = pneg %p47
        %p168 = pneg %p44
        %p169 = pneg %p75
        %p170 = pneg %p72
        %p171 = scmp.lt.s32.totalorder %s16, 1
        %s172 = scalar_select %p171, %s16, 1
        %p173 = scmp.lt.s32.totalorder %s17, 0
        %s174 = scalar_select %p173, %s17, 0
        %s175 = sadd.s32 %s174, %s172
        %s176 = smul.addr %s175, 8
        %s177 = scalar_lea.vmem %s1, %s176
        %p178 = scmp.lt.s32.totalorder %s16, 1
        %s179 = scalar_select %p178, %s16, 1
        %p180 = scmp.lt.s32.totalorder %s17, 0
        %s181 = scalar_select %p180, %s17, 0
        %s182 = sadd.s32 %s181, %s179
        %s183 = smul.addr %s182, 8
        %s184 = scalar_lea.vmem %s1, %s183
        %v185 = vld [vmem:[%s159] sm:$0xff]
        %s186 = scalar_lea.vmem %s159, 8 [#allocation2]
        %v187 = vld [vmem:[%s186] sm:$0xff]
        %v188 = vadd.f32 %v185, %v187
        %s189 = scalar_lea.vmem %s159, 16 [#allocation2]
        %v190 = vld [vmem:[%s189] sm:$0xff]
        %v191 = vadd.f32 %v188, %v190
        %s192 = scalar_lea.vmem %s159, 24 [#allocation2]
        %v193 = vld [vmem:[%s192] sm:$0xff]
        %v194 = vadd.f32 %v191, %v193
        %v195 = vmul.f32 %v194, 0.25
        %vm196 = vcmask 31744
        %197 = vst.msk [vmem:[%s184] sm:$0xff] %vm196, %v195
        %p198 = scmp.lt.s32.totalorder %s16, 1
        %s199 = scalar_select %p198, %s16, 1
        %p200 = scmp.lt.s32.totalorder %s17, 0
        %s201 = scalar_select %p200, %s17, 0
        %s202 = sadd.s32 %s201, %s199
        %s203 = smul.addr %s202, 8
        %s204 = scalar_lea.vmem %s1, %s203
        // Predicated region
        $region63: #{tpu_custom_call.1} parent=57 // pred_check
          %p205 = pneg %p72
        $region64: #{tpu_custom_call.1} parent=57 // pred_check_branch
          %207 = sbr.rel (%p205) target = $region66
        $region65: #{tpu_custom_call.1} parent=57 // pred_region
          _
        $region66: #{tpu_custom_call.1} parent=57 // pred_fallthru
          _
      $region58: #{tpu_custom_call.1} parent=5 // pred_fallthru
        _
      %p208 = scmp.le.s32.totalorder 2, %s7
      // Predicated region
      $region67: #{tpu_custom_call.1} parent=5 // pred_check
        %p209 = pneg %p208
      $region68: #{tpu_custom_call.1} parent=5 // pred_check_branch
        %211 = sbr.rel (%p209) target = $region70
      $region69: #{tpu_custom_call.1} parent=5 // pred_region
        %s212 = ssub.s32 %s7, 2
        // Predicated region
        $region71: #{tpu_custom_call.1} parent=69 // pred_check
          %p213 = pneg %p78
        $region72: #{tpu_custom_call.1} parent=69 // pred_check_branch
          %215 = sbr.rel (%p213) target = $region74
        $region73: #{tpu_custom_call.1} parent=69 // pred_region
          %p216 = scmp.lt.s32.totalorder %s18, 1
          %s217 = scalar_select %p216, %s18, 1
          %p218 = scmp.lt.s32.totalorder %s19, 0
          %s219 = scalar_select %p218, %s19, 0
          %s220 = sadd.s32 %s219, %s217
          %s221 = smul.addr %s220, 8
          %s222 = scalar_lea.vmem %s1, %s221
        $region74: #{tpu_custom_call.1} parent=69 // pred_fallthru
          _
      $region70: #{tpu_custom_call.1} parent=5 // pred_fallthru
        _
    $region6: #{tpu_custom_call.1} parent=1 // loop_footer
      %s11 = sadd.s32 1, %s7
    $region7: #{tpu_custom_call.1} parent=1 // loop_footer_branch
      %6 = sbr.rel target = $region3
    $region8: #{tpu_custom_call.1} parent=1 // loop_exit
      _

</llo_original>
